<compile_context>
chip_gen: v6e
topology: v6e:2x2x1
jax: 0.10.0
libtpu: 0.0.40
codegen_flags: <defaults>
</compile_context>

<pallas_src>
import math

import jax
import jax.numpy as jnp
from jax.experimental import pallas as pl
from jax.experimental.pallas import tpu as pltpu

_LANE = 128      # vreg lane width (last dim)
_SUBLANE = 8     # vreg sublanes (second-to-last dim)
# Per-block budget.  x-in and out are each double-buffered (4x block) plus the
# tiny bias tile; the explicit vmem_limit below covers that on every chip.
_BLOCK_BUDGET_BYTES = 4 * 1024 * 1024
# Below this, XLA's fused add beats the pallas_call launch/pipeline overhead.
_JNP_BYPASS_BYTES = 256 * 1024


def _round_up(x, m):
    return ((x + m - 1) // m) * m


def _pick_tile(full, align, max_elems):
    """Tile along one axis: full extent if it fits; otherwise balanced blocks
    (~full / num_blocks, rounded up to `align`) so the trailing block isn't
    mostly padding."""
    if full <= max_elems:
        return full
    max_tile = max(align, (max_elems // align) * align)
    n_blocks = pl.cdiv(full, max_tile)
    return min(max_tile, _round_up(pl.cdiv(full, n_blocks), align))


def _mosaic_params(block_bytes, bias_bytes, semantics):
    # 2x double-buffered input block + 2x output block + 2x bias tile + slack
    # for Mosaic-internal scratch.  Explicit so the footprint also fits v5e's
    # 16 MiB scoped-VMEM default and stays well under v7x's 64 MiB VMEM.
    vmem = 4 * block_bytes + 2 * bias_bytes + (4 << 20)
    return pltpu.CompilerParams(dimension_semantics=semantics,
                                vmem_limit_bytes=int(min(vmem, 48 << 20)))


def _add_bias_kernel(x_ref, b_ref, o_ref):
    # Pure VPU broadcast-add.  b is either (1, w_tile) (splat down sublanes)
    # or (r_tile, 1) (splat along lanes).
    o_ref[...] = x_ref[...] + b_ref[...]


def _make_col_bias_kernel(rep):
    """Add a resident (C, 1) bias column to a (rep*C, hw_tile) block; the tiny
    bias is replicated down the sublanes in-kernel (no (N*C, 1) bias in HBM)."""
    def kernel(x_ref, b_ref, o_ref):
        b = b_ref[...]                       # (C, 1), resident across the grid
        if rep > 1:
            b = jnp.tile(b, (rep, 1))        # (r_tile, 1); tiny VPU/XLU work
        o_ref[...] = x_ref[...] + b
    return kernel


def _add_bias_rows(x2, bias_row, donate_x):
    """x2 (M, W) + bias_row (W,) broadcast over rows (lane-dense layout)."""
    M, W = x2.shape
    itemsize = x2.dtype.itemsize
    budget_elems = max(_SUBLANE * _LANE, _BLOCK_BUDGET_BYTES // itemsize)

    w_tile = _pick_tile(W, _LANE, max(_LANE, budget_elems // _SUBLANE))
    m_tile = _pick_tile(M, _SUBLANE, max(_SUBLANE, budget_elems // w_tile))

    # v7x has two TensorCores: make sure the (parallel) grid has >= 2 programs.
    if pl.cdiv(M, m_tile) * pl.cdiv(W, w_tile) == 1:
        if M >= 2 * _SUBLANE:
            m_tile = _round_up(pl.cdiv(M, 2), _SUBLANE)
        elif W >= 2 * _LANE:
            w_tile = _round_up(pl.cdiv(W, 2), _LANE)

    b2 = bias_row.astype(x2.dtype).reshape(1, W)
    return pl.pallas_call(
        _add_bias_kernel,
        out_shape=jax.ShapeDtypeStruct((M, W), x2.dtype),
        grid=(pl.cdiv(M, m_tile), pl.cdiv(W, w_tile)),
        in_specs=[
            pl.BlockSpec((m_tile, w_tile), lambda i, j: (i, j)),
            pl.BlockSpec((1, w_tile), lambda i, j: (0, j)),
        ],
        out_specs=pl.BlockSpec((m_tile, w_tile), lambda i, j: (i, j)),
        compiler_params=_mosaic_params(m_tile * w_tile * itemsize,
                                       w_tile * itemsize,
                                       ("parallel", "parallel")),
        input_output_aliases={0: 0} if donate_x else {},
    )(x2, b2)


def _pick_row_group(N, C):
    """Number of consecutive (N, C) rows to pack into one lane-dense row (a
    free row-major reshape).  Must divide N; prefers packed widths that are
    multiples of 128 (fully unmasked stores)."""
    if C >= _LANE or N <= 1:
        return 1
    g_ideal = _LANE // math.gcd(C, _LANE)          # packed width % 128 == 0
    g_cap = max(g_ideal, 32768 // C)               # keep packed rows sane-width
    for g in range(g_ideal, min(N, g_cap) + 1, g_ideal):
        if N % g == 0:
            return g
    g_min = -(-_LANE // C)                         # packed width >= 128
    for g in range(g_min, min(N, g_cap) + 1):
        if N % g == 0:
            return g
    return 1   # pathological N (no small divisor): narrow-row fallback


def _add_bias_2d(x, bias, donate_x):
    N, C = x.shape
    b = bias.astype(x.dtype)
    g = _pick_row_group(N, C)
    if g > 1:
        x2 = x.reshape(N // g, g * C)              # contiguous, no data movement
        out = _add_bias_rows(x2, jnp.tile(b, g), donate_x)
        return out.reshape(N, C)
    return _add_bias_rows(x, b, donate_x)


def _add_bias_4d(x, bias, donate_x):
    N, C, H, W = x.shape
    HW = H * W
    b = bias.astype(x.dtype)

    if HW < _LANE:
        # Small feature maps (7x7, 14x14, ...): HW on the lane axis would leave
        # most lanes masked.  Merge C into the row: (N, C*H*W) is lane-dense and
        # the repeated (1, C*HW) bias row is tiny.
        out = _add_bias_rows(x.reshape(N, C * HW), jnp.repeat(b, HW), donate_x)
        return out.reshape(N, C, H, W)

    # HW >= 128: (N*C, HW) keeps HW lane-dense with no transpose.
    R = N * C
    x2 = x.reshape(R, HW)
    itemsize = x.dtype.itemsize
    budget_elems = max(_SUBLANE * _LANE, _BLOCK_BUDGET_BYTES // itemsize)

    u = (C * _SUBLANE) // math.gcd(C, _SUBLANE)    # lcm(C, 8)
    # Channel-aligned row blocks (multiple of u) let the bias stay a resident
    # (C, 1) tile replicated in-kernel instead of a pre-tiled (N*C, 1) array.
    channel_aligned = (u * _LANE <= budget_elems) or (R * _LANE <= budget_elems)
    row_unit = u if channel_aligned else _SUBLANE

    row_floor = min(R, row_unit)
    hw_tile = _pick_tile(HW, _LANE, max(_LANE, budget_elems // row_floor))
    rows_budget = max(row_floor, budget_elems // hw_tile)
    r_tile = R if R <= rows_budget else _pick_tile(R, row_unit, rows_budget)

    # v7x has two TensorCores: make sure the (parallel) grid has >= 2 programs.
    if pl.cdiv(R, r_tile) * pl.cdiv(HW, hw_tile) == 1:
        if HW >= 2 * _LANE:
            hw_tile = _round_up(pl.cdiv(HW, 2), _LANE)
        elif R >= 2 * row_unit:
            r_tile = _round_up(pl.cdiv(R, 2), row_unit)

    x_spec = pl.BlockSpec((r_tile, hw_tile), lambda r, h: (r, h))
    if channel_aligned:
        # r_tile is a multiple of C (or the full extent R = N*C), so every row
        # block starts on a channel boundary.
        kernel = _make_col_bias_kernel(r_tile // C)
        b2 = b.reshape(C, 1)
        bias_spec = pl.BlockSpec((C, 1), lambda r, h: (0, 0))   # resident
        bias_bytes = C * itemsize
    else:
        # Huge-C fallback: pre-tiled per-row bias column; re-DMA'd only when the
        # row block changes (traffic <= 1/128 of x).
        kernel = _add_bias_kernel
        b2 = jnp.tile(b, N).reshape(R, 1)
        bias_spec = pl.BlockSpec((r_tile, 1), lambda r, h: (r, 0))
        bias_bytes = r_tile * itemsize

    out2 = pl.pallas_call(
        kernel,
        out_shape=jax.ShapeDtypeStruct((R, HW), x.dtype),
        grid=(pl.cdiv(R, r_tile), pl.cdiv(HW, hw_tile)),
        in_specs=[x_spec, bias_spec],
        out_specs=pl.BlockSpec((r_tile, hw_tile), lambda r, h: (r, h)),
        compiler_params=_mosaic_params(r_tile * hw_tile * itemsize, bias_bytes,
                                       ("parallel", "parallel")),
        input_output_aliases={0: 0} if donate_x else {},
    )(x2, b2)
    return out2.reshape(N, C, H, W)


def add_bias(x, bias, donate_x=False):
    """Pallas equivalent of AddBias(bias).forward(x).

    bias: 1-D (C,) -- the values handed to AddBias.__init__ (stored as (C, 1)).
    x:    (N, C) or (N, C, H, W), matching the PyTorch forward.
    donate_x: alias x with the output (in-place add); only a win when the
      caller actually donates x via jax.jit donate_argnums.
    """
    bias = bias.reshape(-1)
    if x.ndim not in (2, 4):
        raise ValueError(f"AddBias expects 2-D or 4-D input, got ndim={x.ndim}")
    C = x.shape[1]
    if bias.shape[0] != C:
        raise ValueError(f"bias has {bias.shape[0]} entries, expected {C}")

    if x.size * x.dtype.itemsize <= _JNP_BYPASS_BYTES:
        # Tiny tensors: a pallas_call is pure launch/pipeline overhead.
        shape = (1, C) if x.ndim == 2 else (1, C, 1, 1)
        return x + bias.astype(x.dtype).reshape(shape)

    if x.ndim == 2:
        return _add_bias_2d(x, bias, donate_x)
    return _add_bias_4d(x, bias, donate_x)


if __name__ == "__main__":
    key = jax.random.PRNGKey(0)
    k_bias, k1, k2, k3, k4 = jax.random.split(key, 5)

    C = 4
    bias = jax.random.normal(k_bias, (C,), dtype=jnp.float32)

    def ref2(x):
        return x + bias.reshape(1, C)

    def ref4(x):
        return x + bias.reshape(1, C, 1, 1)

    # The demo shapes are below the jnp bypass, so exercise the Pallas paths
    # directly to make sure every kernel variant compiles and runs on TPU.

    # 4-D, wide feature map (H*W = 256 >= 128): (N*C, HW) layout, resident
    # (C, 1) bias replicated in-kernel, grid split across two programs.
    x4 = jax.random.normal(k1, (2, C, 16, 16), dtype=jnp.float32)
    out4 = jax.block_until_ready(_add_bias_4d(x4, bias, False))
    assert jnp.allclose(out4, ref4(x4), atol=1e-6), "4D wide mismatch"

    # 4-D, narrow feature map (H*W = 49 < 128): (N, C*H*W) lane-dense layout.
    x4n = jax.random.normal(k2, (2, C, 7, 7), dtype=jnp.float32)
    out4n = jax.block_until_ready(_add_bias_4d(x4n, bias, False))
    assert jnp.allclose(out4n, ref4(x4n), atol=1e-6), "4D narrow mismatch"

    # 2-D, N divisible by the packing group (64 % 32 == 0): lane-dense rows.
    x2 = jax.random.normal(k3, (64, C), dtype=jnp.float32)
    out2 = jax.block_until_ready(_add_bias_2d(x2, bias, False))
    assert jnp.allclose(out2, ref2(x2), atol=1e-6), "2D packed mismatch"

    # 2-D, tiny batch with no usable packing group: narrow fallback blocks.
    x2s = jax.random.normal(k4, (2, C), dtype=jnp.float32)
    out2s = jax.block_until_ready(_add_bias_2d(x2s, bias, False))
    assert jnp.allclose(out2s, ref2(x2s), atol=1e-6), "2D small mismatch"

    # Public entry point (these demo sizes take the tiny-tensor jnp bypass).
    outp = jax.block_until_ready(add_bias(x4, bias))
    assert jnp.allclose(outp, ref4(x4), atol=1e-6), "dispatcher mismatch"

    print("KERNEL_OK")
</pallas_src>

<mosaic_0001>
module attributes {stable_mosaic.version = 11 : i64} {
  func.func @kernel(%arg0: i32, %arg1: i32, %arg2: memref<8x128xf32, #tpu.memory_space<vmem>>, %arg3: memref<4x1xf32, #tpu.memory_space<vmem>>, %arg4: memref<8x128xf32, #tpu.memory_space<vmem>>) attributes {dimension_semantics = [#tpu.dimension_semantics<parallel>, #tpu.dimension_semantics<parallel>], iteration_bounds = array<i64: 1, 2>, scalar_prefetch = 0 : i64, scratch_operands = 0 : i64, tpu.core_type = #tpu.core_type<tc>, window_params = [{transform_indices = @transform_0, window_bounds = array<i64: 8, 128>}, {pipeline_mode = #tpu.pipeline_mode<synchronous>, transform_indices = @transform_1, window_bounds = array<i64: 4, 1>}, {transform_indices = @transform_2, window_bounds = array<i64: 8, 128>}]} {
    %c0 = arith.constant 0 : index
    %c0_0 = arith.constant 0 : index
    %0 = vector.load %arg3[%c0, %c0_0] : memref<4x1xf32, #tpu.memory_space<vmem>>, vector<4x1xf32>
    %1 = tpu.concatenate %0, %0 in 0 : vector<4x1xf32>, vector<4x1xf32> -> vector<8x1xf32>
    %c0_1 = arith.constant 0 : index
    %c0_2 = arith.constant 0 : index
    %2 = vector.load %arg2[%c0_1, %c0_2] : memref<8x128xf32, #tpu.memory_space<vmem>>, vector<8x128xf32>
    %3 = vector.broadcast %1 : vector<8x1xf32> to vector<8x128xf32>
    %4 = arith.addf %2, %3 : vector<8x128xf32>
    %c0_3 = arith.constant 0 : index
    %c0_4 = arith.constant 0 : index
    %5 = vector.load %arg4[%c0_3, %c0_4] : memref<8x128xf32, #tpu.memory_space<vmem>>, vector<8x128xf32>
    tpu.vector_store %arg4[%c0_3, %c0_4], %4 {strides = array<i32>} : memref<8x128xf32, #tpu.memory_space<vmem>>, vector<8x128xf32>,
    return
  }
  func.func @transform_0(%arg0: i32, %arg1: i32) -> (i32, i32) {
    %c0_i32 = arith.constant 0 : i32
    return %arg0, %arg1 : i32, i32
  }
  func.func @transform_1(%arg0: i32, %arg1: i32) -> (i32, i32) {
    %c0_i32 = arith.constant 0 : i32
    %c0_i32_0 = arith.constant 0 : i32
    %c0_i32_1 = arith.constant 0 : i32
    return %c0_i32, %c0_i32_0 : i32, i32
  }
  func.func @transform_2(%arg0: i32, %arg1: i32) -> (i32, i32) {
    %c0_i32 = arith.constant 0 : i32
    return %arg0, %arg1 : i32, i32
  }
}

</mosaic_0001>

<llo_original>
// kernel: tpu_custom_call.1
$region0: #{tpu_custom_call.1}
  #allocation0 [shape = 'u32[]', space=smem, size = 0x4, offset = 0x4, fixed_abs, tag = 'smem constant byte address 0x4 - core index']
  #allocation1 [shape = 'u32[144,128]{1,0:T(1,128)}', space=vmem, size = 0x12000, scoped, tag = 'internal scratch']
  %s0 = inlined_call_operand.hbm [shape: f32[8,256], index: 0, kind: input, shape index: {}]
  %s1 = inlined_call_operand.vmem [shape: f32[4,1], index: 1, kind: input, shape index: {}]
  %s2 = inlined_call_operand.hbm [shape: f32[8,256], index: 2, kind: output, shape index: {}]
  %s3 = sld [smem:[#allocation0]]
  $region45: #{tpu_custom_call.1} parent=0
    _
  %s5 = ssub.s32 1, %s3
  %s6 = scalar_select 0, %s5, %s3
  $region1: #{tpu_custom_call.1} parent=0
    #allocation2 [shape = 'u8[8192]{0}', space=vmem, size = 0x2000, scoped, tag = 'input window, operand 0']
    #allocation3 [shape = 's32[2]{0}', space=sflag, size = 0x8, scoped, tag = 'scoped memory for tpu_custom_call.1']
    #allocation4 [shape = 's32[2]{0}', space=sflag, size = 0x8, scoped, tag = 'scoped memory for tpu_custom_call.1']
    #allocation5 [shape = 'u8[8192]{0}', space=vmem, size = 0x2000, scoped, tag = 'output window, operand 0']
    %7 = vsyncpa [#allocation3], 0
    %s8 = scalar_lea.sflag [#allocation3], 1
    %9 = vsyncpa %s8, 0
    %10 = vsyncpa [#allocation4], 0
    %s11 = scalar_lea.sflag [#allocation4], 1
    %12 = vsyncpa %s11, 0
    loop: start=0, step=1, limit=4
    $region2: #{tpu_custom_call.1} parent=1 // loop_pre_header
      _
    $region3: #{tpu_custom_call.1} parent=1 // loop_header
      %s14 = sphi 0, %s18
      %p15 = scmp.ge.s32.totalorder %s14, 4
      %s21 = sphi 0, %s33
      %s22 = sphi 0, %s29
      %s23 = sphi 0, %s21
      %s24 = sphi 0, %s22
      %s25 = sphi 0, %s23
      %s26 = sphi 0, %s24
      %s38 = sphi 0, %s40
      %s41 = sphi 0, %s38
      %s42 = sphi 0, %s41
      %s58 = sphi 0, %s42
      %s62 = sphi 0, %s62
      %s64 = sphi 0, %s62
      %s65 = sphi 0, %s64
      %s79 = sphi 0, %s65
      %s87 = sphi 0, %s89
      %s90 = sphi 0, %s87
      %s91 = sphi 0, %s90
      %s107 = sphi 0, %s91
    $region4: #{tpu_custom_call.1} parent=1 // loop_header_branch
      %17 = sbr.rel (%p15) target = $region8
    $region5: #{tpu_custom_call.1} parent=1 // loop_body
      %s19 = ssub.s32 %s14, 1
      %s20 = ssub.s32 %s14, 2
      %s27 = sadd.s32 1, %s22
      %p28 = scmp.ge.s32.totalorder %s27, 2
      %s29 = scalar_select %p28, 0, %s27
      %s30 = sadd.s32 1, %s21
      %s31 = scalar_select %p28, %s30, %s21
      %p32 = scmp.ge.s32.totalorder %s31, 1
      %s33 = scalar_select %p32, 0, %s31
      %s34 = ssub.s32 %s21, %s33
      %s35 = ssub.s32 %s22, %s29
      %s36 = sor.u32 %s34, %s35
      %p37 = scmp.eq.s32.totalorder %s36, 0
      %s39 = sadd.s32 %s38, 1
      %s40 = scalar_select %p37, %s38, %s39
      %p43 = pneg %p37
      %p44 = scmp.eq.s32.totalorder %s14, 1
      %p45 = por %p43, %p44
      %p46 = scmp.ne.s32.totalorder %s38, %s41
      %p47 = scmp.eq.s32.totalorder %s14, 0
      %p48 = por %p46, %p47
      %p49 = scmp.ne.s32.totalorder %s38, %s41
      %p50 = scmp.eq.s32.totalorder %s19, 1
      %p51 = por %p49, %p50
      %p52 = scmp.ne.s32.totalorder %s41, %s42
      %p53 = scmp.eq.s32.totalorder %s19, 0
      %p54 = por %p52, %p53
      %p55 = scmp.ne.s32.totalorder %s41, %s42
      %p56 = scmp.eq.s32.totalorder %s20, 1
      %p57 = por %p55, %p56
      %p59 = scmp.ne.s32.totalorder %s42, %s58
      %p60 = scmp.eq.s32.totalorder %s20, 0
      %p61 = por %p59, %p60
      %s63 = sadd.s32 %s62, 1
      %p66 = scmp.eq.s32.totalorder %s14, 1
      %p67 = scmp.ne.s32.totalorder %s62, %s64
      %p68 = scmp.eq.s32.totalorder %s14, 0
      %p69 = por %p67, %p68
      %p70 = scmp.ne.s32.totalorder %s62, %s64
      %p71 = scmp.eq.s32.totalorder %s19, 1
      %p72 = por %p70, %p71
      %p73 = scmp.ne.s32.totalorder %s64, %s65
      %p74 = scmp.eq.s32.totalorder %s19, 0
      %p75 = por %p73, %p74
      %p76 = scmp.ne.s32.totalorder %s64, %s65
      %p77 = scmp.eq.s32.totalorder %s20, 1
      %p78 = por %p76, %p77
      %p80 = scmp.ne.s32.totalorder %s65, %s79
      %p81 = scmp.eq.s32.totalorder %s20, 0
      %p82 = por %p80, %p81
      %s83 = ssub.s32 %s21, %s33
      %s84 = ssub.s32 %s22, %s29
      %s85 = sor.u32 %s83, %s84
      %p86 = scmp.eq.s32.totalorder %s85, 0
      %s88 = sadd.s32 %s87, 1
      %s89 = scalar_select %p86, %s87, %s88
      %p92 = pneg %p86
      %p93 = scmp.eq.s32.totalorder %s14, 1
      %p94 = por %p92, %p93
      %p95 = scmp.ne.s32.totalorder %s87, %s90
      %p96 = scmp.eq.s32.totalorder %s14, 0
      %p97 = por %p95, %p96
      %p98 = scmp.ne.s32.totalorder %s87, %s90
      %p99 = scmp.eq.s32.totalorder %s19, 1
      %p100 = por %p98, %p99
      %p101 = scmp.ne.s32.totalorder %s90, %s91
      %p102 = scmp.eq.s32.totalorder %s19, 0
      %p103 = por %p101, %p102
      %p104 = scmp.ne.s32.totalorder %s90, %s91
      %p105 = scmp.eq.s32.totalorder %s20, 1
      %p106 = por %p104, %p105
      %p108 = scmp.ne.s32.totalorder %s91, %s107
      %p109 = scmp.eq.s32.totalorder %s20, 0
      %p110 = por %p108, %p109
      %p111 = scmp.le.s32.totalorder 1, %s14
      %p112 = scmp.lt.s32.totalorder %s14, 3
      %p113 = pnand %p111, %p112
      %p114 = pneg %p113
      // Predicated region
      $region9: #{tpu_custom_call.1} parent=5 // pred_check
        _
      $region10: #{tpu_custom_call.1} parent=5 // pred_check_branch
        %116 = sbr.rel (%p113) target = $region12
      $region11: #{tpu_custom_call.1} parent=5 // pred_region
        %s117 = ssub.s32 %s14, 1
        // Predicated region
        $region13: #{tpu_custom_call.1} parent=11 // pred_check
          %p118 = pneg %p75
        $region14: #{tpu_custom_call.1} parent=11 // pred_check_branch
          %120 = sbr.rel (%p118) target = $region16
        $region15: #{tpu_custom_call.1} parent=11 // pred_region
          _
        $region16: #{tpu_custom_call.1} parent=11 // pred_fallthru
          _
      $region12: #{tpu_custom_call.1} parent=5 // pred_fallthru
        _
      %p121 = scmp.lt.s32.totalorder %s14, 2
      // Predicated region
      $region17: #{tpu_custom_call.1} parent=5 // pred_check
        %p122 = pneg %p121
      $region18: #{tpu_custom_call.1} parent=5 // pred_check_branch
        %124 = sbr.rel (%p122) target = $region20
      $region19: #{tpu_custom_call.1} parent=5 // pred_region
        // Predicated region
        $region21: #{tpu_custom_call.1} parent=19 // pred_check
          %p125 = pneg %p48
        $region22: #{tpu_custom_call.1} parent=19 // pred_check_branch
          %127 = sbr.rel (%p125) target = $region24
        $region23: #{tpu_custom_call.1} parent=19 // pred_region
          %s128 = sand.u32 %s38, 1
          %s129 = scalar_lea.sflag [#allocation3], %s128
          %s130 = sand.u32 %s38, 1
          %s131 = smul.addr %s130, 8
          %s132 = scalar_lea.vmem [#allocation2], %s131
          %s134 = ssub.s32 128, 128
          %135 = vsyncadd %s129, %s134
          %s136 = smul.addr %s21, 2
          %s137 = sadd.s32 %s22, %s136
          %s138 = smul.addr %s137, 128
          %s139 = scalar_lea.hbm %s0, %s138
          %s141 = sshll.u32 %s132, 4
          %s142 = int_to_ptr.vmem [resolvable:$true] %s141
          %144 = dma.hbm_to_vmem [thread:$0]  %s139, 128, %s142, %s129
        $region24: #{tpu_custom_call.1} parent=19 // pred_fallthru
          _
      $region20: #{tpu_custom_call.1} parent=5 // pred_fallthru
        _
      %p145 = scmp.le.s32.totalorder 1, %s14
      %p146 = scmp.lt.s32.totalorder %s14, 3
      %p147 = pnand %p145, %p146
      %p148 = pneg %p147
      // Predicated region
      $region25: #{tpu_custom_call.1} parent=5 // pred_check
        _
      $region26: #{tpu_custom_call.1} parent=5 // pred_check_branch
        %150 = sbr.rel (%p147) target = $region28
      $region27: #{tpu_custom_call.1} parent=5 // pred_region
        %s151 = ssub.s32 %s14, 1
        %s152 = sand.u32 %s41, 1
        %s153 = scalar_lea.sflag [#allocation3], %s152
        %s154 = sand.u32 %s41, 1
        %s155 = smul.addr %s154, 8
        %s156 = scalar_lea.vmem [#allocation2], %s155
        // Predicated region
        $region29: #{tpu_custom_call.1} parent=27 // pred_check
          %p157 = pneg %p54
        $region30: #{tpu_custom_call.1} parent=27 // pred_check_branch
          %159 = sbr.rel (%p157) target = $region32
        $region31: #{tpu_custom_call.1} parent=27 // pred_region
          %160 = dma.done %s153, 128
        $region32: #{tpu_custom_call.1} parent=27 // pred_fallthru
          _
        %s161 = sand.u32 %s41, 1
        %s162 = scalar_lea.sflag [#allocation3], %s161
        %s163 = sand.u32 %s41, 1
        %s164 = smul.addr %s163, 8
        %s165 = scalar_lea.vmem [#allocation2], %s164
        %p166 = pneg %p54
        %p167 = pneg %p51
        %p168 = pneg %p75
        %p169 = pneg %p72
        %p170 = pneg %p103
        %p171 = pneg %p100
        %s172 = sand.u32 %s90, 1
        %s173 = scalar_lea.sflag [#allocation4], %s172
        %s174 = sand.u32 %s90, 1
        %s175 = smul.addr %s174, 8
        %s176 = scalar_lea.vmem [#allocation5], %s175
        %v177 = vld [vmem:[%s1] sm:$0xf]
        %v179 = vrot.slane %v177, 4
        %vm181 = vcmask 1043456
        %v182 = vsel %vm181, %v177, %v179
        %v183 = vld [vmem:[%s156] sm:$0xff]
        %185 = vset.pattern.permute.xlu0 0
        %186 = vperm.xlu0 %185, %v182
        %v187 = vpop.permute.xlu0 %186
        %v189 = vadd.f32 %v183, %v187
        %190 = vst [vmem:[%s176] sm:$0xff] %v189
        %s191 = sand.u32 %s90, 1
        %s192 = scalar_lea.sflag [#allocation4], %s191
        %s193 = sand.u32 %s90, 1
        %s194 = smul.addr %s193, 8
        %s195 = scalar_lea.vmem [#allocation5], %s194
        // Predicated region
        $region33: #{tpu_custom_call.1} parent=27 // pred_check
          %p196 = pneg %p100
        $region34: #{tpu_custom_call.1} parent=27 // pred_check_branch
          %198 = sbr.rel (%p196) target = $region36
        $region35: #{tpu_custom_call.1} parent=27 // pred_region
          %s200 = ssub.s32 128, 128
          %201 = vsyncadd %s192, %s200
          %s202 = smul.addr %s23, 2
          %s203 = sadd.s32 %s24, %s202
          %s204 = smul.addr %s203, 128
          %s205 = scalar_lea.hbm %s2, %s204
          %s207 = sshll.u32 %s195, 4
          %s208 = int_to_ptr.vmem [resolvable:$true] %s207
          %210 = dma.vmem_to_hbm [thread:$0]  %s208, 128, %s205, %s192
        $region36: #{tpu_custom_call.1} parent=27 // pred_fallthru
          _
      $region28: #{tpu_custom_call.1} parent=5 // pred_fallthru
        _
      %p211 = scmp.le.s32.totalorder 2, %s14
      // Predicated region
      $region37: #{tpu_custom_call.1} parent=5 // pred_check
        %p212 = pneg %p211
      $region38: #{tpu_custom_call.1} parent=5 // pred_check_branch
        %214 = sbr.rel (%p212) target = $region40
      $region39: #{tpu_custom_call.1} parent=5 // pred_region
        %s215 = ssub.s32 %s14, 2
        // Predicated region
        $region41: #{tpu_custom_call.1} parent=39 // pred_check
          %p216 = pneg %p106
        $region42: #{tpu_custom_call.1} parent=39 // pred_check_branch
          %218 = sbr.rel (%p216) target = $region44
        $region43: #{tpu_custom_call.1} parent=39 // pred_region
          %s219 = sand.u32 %s91, 1
          %s220 = scalar_lea.sflag [#allocation4], %s219
          %s221 = sand.u32 %s91, 1
          %s222 = smul.addr %s221, 8
          %s223 = scalar_lea.vmem [#allocation5], %s222
          %224 = dma.done %s220, 128
        $region44: #{tpu_custom_call.1} parent=39 // pred_fallthru
          _
      $region40: #{tpu_custom_call.1} parent=5 // pred_fallthru
        _
    $region6: #{tpu_custom_call.1} parent=1 // loop_footer
      %s18 = sadd.s32 1, %s14
    $region7: #{tpu_custom_call.1} parent=1 // loop_footer_branch
      %13 = sbr.rel target = $region3
    $region8: #{tpu_custom_call.1} parent=1 // loop_exit
      _
    %225 = vsyncpa [#allocation3], 1
    %s226 = scalar_lea.sflag [#allocation3], 1
    %227 = vsyncpa %s226, 1
    %228 = vsyncpa [#allocation4], 1
    %s229 = scalar_lea.sflag [#allocation4], 1
    %230 = vsyncpa %s229, 1

</llo_original>
